<compile_context>
chip_gen: v7x
topology: tpu7x:2x2x1
jax: 0.10.0
libtpu: 0.0.40
codegen_flags: <defaults>
</compile_context>

<pallas_src>
import jax
import jax.numpy as jnp
from jax.experimental import pallas as pl
from jax.experimental.pallas import tpu as pltpu


def _rnn_kernel(x_ref, wih_ref, whh_ref, b_ref, h0_ref, fcw_ref, fcb_ref,
                out_ref, hid_ref):
    # x_ref is the whole sequence, time-major and flattened: (T*B, I).
    TB, _ = x_ref.shape
    B, H = h0_ref.shape
    T = TB // B

    # (1) Input projection for ALL timesteps as ONE MXU matmul (hoisted off the
    #     serial recurrence), with the fused RNN bias (b_ih + b_hh) added once.
    p_all = (jnp.dot(x_ref[...], wih_ref[...],
                     preferred_element_type=jnp.float32)
             + b_ref[...])                         # (T*B, H), fp32, time-major

    # (2) Recurrence: h carried in registers, one small matmul per step.
    #     T is small and static here, so the loop is fully unrolled; for long
    #     sequences this becomes a time-chunked grid axis + fori_loop(unroll=True).
    w_hh = whh_ref[...]                            # resident (H, H)
    h = h0_ref[...].astype(jnp.float32)            # (B, H) fp32 state
    for t in range(T):
        pre = p_all[t * B:(t + 1) * B, :] + jnp.dot(
            h, w_hh, preferred_element_type=jnp.float32)
        h = jnp.tanh(pre)

    # (3) Final hidden + fc(hidden[-1]).
    hid_ref[...] = h.astype(hid_ref.dtype)
    out_ref[...] = (jnp.dot(h, fcw_ref[...],
                            preferred_element_type=jnp.float32)
                    + fcb_ref[...]).astype(out_ref.dtype)


def rnn_forward(x, hidden, params):
    """x: (B, T, I) batch_first like PyTorch; hidden: (1, B, H).
    Returns (fc_output (B, O), hidden (1, B, H))."""
    w_ih, w_hh, b_ih, b_hh, w_fc, b_fc = (
        params["w_ih"], params["w_hh"], params["b_ih"], params["b_hh"],
        params["w_fc"], params["b_fc"])

    B, T, I = x.shape
    H = w_ih.shape[0]
    O = w_fc.shape[0]

    # Time-major flatten so the hoisted input projection is one dense
    # (T*B, I) slab.  (Cheap at these sizes; for very long sequences the
    # projection would be done on the original (B, T, I) layout instead to
    # avoid the extra HBM pass of the transpose.)
    x_flat = jnp.transpose(x, (1, 0, 2)).reshape(T * B, I)
    h0 = hidden[0]                              # (B, H)
    wih_t = w_ih.T                              # (I, H)
    whh_t = w_hh.T                              # (H, H)
    b_rnn = (b_ih + b_hh).reshape(1, H)         # (1, H) fused RNN bias
    wfc_t = w_fc.T                              # (H, O)
    b_fc2 = b_fc.reshape(1, O)                  # (1, O)

    full2 = lambda i: (0, 0)

    out, hid = pl.pallas_call(
        _rnn_kernel,
        out_shape=(jax.ShapeDtypeStruct((B, O), x.dtype),
                   jax.ShapeDtypeStruct((B, H), x.dtype)),
        grid_spec=pl.GridSpec(
            grid=(1,),   # whole (small) problem at a single grid point
            in_specs=[
                pl.BlockSpec((T * B, I), full2),   # x, time-major flattened
                pl.BlockSpec((I, H), full2),       # W_ih^T
                pl.BlockSpec((H, H), full2),       # W_hh^T
                pl.BlockSpec((1, H), full2),       # b_ih + b_hh
                pl.BlockSpec((B, H), full2),       # h0
                pl.BlockSpec((H, O), full2),       # W_fc^T
                pl.BlockSpec((1, O), full2),       # b_fc
            ],
            out_specs=[
                pl.BlockSpec((B, O), full2),       # fc(hidden[-1])
                pl.BlockSpec((B, H), full2),       # final hidden
            ],
        ),
        compiler_params=pltpu.CompilerParams(
            dimension_semantics=("arbitrary",)),
    )(x_flat, wih_t, whh_t, b_rnn, h0, wfc_t, b_fc2)

    return out, hid.reshape(1, B, H)


def _reference(x, hidden, params):
    """Pure-JAX reference of the PyTorch forward (for sanity check)."""
    w_ih, w_hh, b_ih, b_hh, w_fc, b_fc = (
        params["w_ih"], params["w_hh"], params["b_ih"], params["b_hh"],
        params["w_fc"], params["b_fc"])
    h = hidden[0]
    for t in range(x.shape[1]):
        h = jnp.tanh(x[:, t, :] @ w_ih.T + b_ih + h @ w_hh.T + b_hh)
    out = h @ w_fc.T + b_fc
    return out, h[None]


if __name__ == "__main__":
    # Small shapes consistent with the module (hidden_size = 128 as in the spec).
    B, T, I, H, O = 2, 8, 16, 128, 8

    key = jax.random.PRNGKey(0)
    kx, k1, k2, k3, k4, k5, k6 = jax.random.split(key, 7)

    x = jax.random.normal(kx, (B, T, I), dtype=jnp.float32)
    hidden0 = jnp.zeros((1, B, H), dtype=jnp.float32)   # like init_hidden(), batched

    s = 1.0 / jnp.sqrt(H)
    params = {
        "w_ih": jax.random.uniform(k1, (H, I), jnp.float32, -s, s),
        "w_hh": jax.random.uniform(k2, (H, H), jnp.float32, -s, s),
        "b_ih": jax.random.uniform(k3, (H,), jnp.float32, -s, s),
        "b_hh": jax.random.uniform(k4, (H,), jnp.float32, -s, s),
        "w_fc": jax.random.uniform(k5, (O, H), jnp.float32, -s, s),
        "b_fc": jax.random.uniform(k6, (O,), jnp.float32, -s, s),
    }

    out, hid = rnn_forward(x, hidden0, params)
    out, hid = jax.block_until_ready(out), jax.block_until_ready(hid)

    ref_out, ref_hid = _reference(x, hidden0, params)
    assert out.shape == (B, O) and hid.shape == (1, B, H)
    assert jnp.allclose(out, ref_out, atol=1e-4, rtol=1e-4)
    assert jnp.allclose(hid, ref_hid, atol=1e-4, rtol=1e-4)

    print("KERNEL_OK")
</pallas_src>

<mosaic_0001>
module attributes {stable_mosaic.version = 11 : i64} {
  func.func @_rnn_kernel(%arg0: i32, %arg1: memref<16x16xf32, #tpu.memory_space<vmem>>, %arg2: memref<16x128xf32, #tpu.memory_space<vmem>>, %arg3: memref<128x128xf32, #tpu.memory_space<vmem>>, %arg4: memref<1x128xf32, #tpu.memory_space<vmem>>, %arg5: memref<2x128xf32, #tpu.memory_space<vmem>>, %arg6: memref<128x8xf32, #tpu.memory_space<vmem>>, %arg7: memref<1x8xf32, #tpu.memory_space<vmem>>, %arg8: memref<2x8xf32, #tpu.memory_space<vmem>>, %arg9: memref<2x128xf32, #tpu.memory_space<vmem>>) attributes {dimension_semantics = [#tpu.dimension_semantics<arbitrary>], iteration_bounds = array<i64: 1>, scalar_prefetch = 0 : i64, scratch_operands = 0 : i64, tpu.core_type = #tpu.core_type<tc>, window_params = [{pipeline_mode = #tpu.pipeline_mode<synchronous>, transform_indices = @transform_0, window_bounds = array<i64: 16, 16>}, {pipeline_mode = #tpu.pipeline_mode<synchronous>, transform_indices = @transform_1, window_bounds = array<i64: 16, 128>}, {pipeline_mode = #tpu.pipeline_mode<synchronous>, transform_indices = @transform_2, window_bounds = array<i64: 128, 128>}, {pipeline_mode = #tpu.pipeline_mode<synchronous>, transform_indices = @transform_3, window_bounds = array<i64: 1, 128>}, {pipeline_mode = #tpu.pipeline_mode<synchronous>, transform_indices = @transform_4, window_bounds = array<i64: 2, 128>}, {pipeline_mode = #tpu.pipeline_mode<synchronous>, transform_indices = @transform_5, window_bounds = array<i64: 128, 8>}, {pipeline_mode = #tpu.pipeline_mode<synchronous>, transform_indices = @transform_6, window_bounds = array<i64: 1, 8>}, {pipeline_mode = #tpu.pipeline_mode<synchronous>, transform_indices = @transform_7, window_bounds = array<i64: 2, 8>}, {pipeline_mode = #tpu.pipeline_mode<synchronous>, transform_indices = @transform_8, window_bounds = array<i64: 2, 128>}]} {
    %c0 = arith.constant 0 : index
    %c0_0 = arith.constant 0 : index
    %0 = vector.load %arg1[%c0, %c0_0] : memref<16x16xf32, #tpu.memory_space<vmem>>, vector<16x16xf32>
    %c0_1 = arith.constant 0 : index
    %c0_2 = arith.constant 0 : index
    %1 = vector.load %arg2[%c0_1, %c0_2] : memref<16x128xf32, #tpu.memory_space<vmem>>, vector<16x128xf32>
    %cst = arith.constant dense<0.000000e+00> : vector<16x128xf32>
    %2 = tpu.matmul %0, %1, %cst {dimension_numbers = #tpu.dot_dimension_numbers<[1], [0], [0], [1], [0, 0, 1, 1], [], []>} : vector<16x16xf32>, vector<16x128xf32>, vector<16x128xf32> -> vector<16x128xf32>
    %c0_3 = arith.constant 0 : index
    %c0_4 = arith.constant 0 : index
    %3 = vector.load %arg4[%c0_3, %c0_4] : memref<1x128xf32, #tpu.memory_space<vmem>>, vector<1x128xf32>
    %4 = vector.broadcast %3 : vector<1x128xf32> to vector<16x128xf32>
    %5 = arith.addf %2, %4 : vector<16x128xf32>
    %c0_5 = arith.constant 0 : index
    %c0_6 = arith.constant 0 : index
    %6 = vector.load %arg3[%c0_5, %c0_6] : memref<128x128xf32, #tpu.memory_space<vmem>>, vector<128x128xf32>
    %c0_7 = arith.constant 0 : index
    %c0_8 = arith.constant 0 : index
    %7 = vector.load %arg5[%c0_7, %c0_8] : memref<2x128xf32, #tpu.memory_space<vmem>>, vector<2x128xf32>
    %8 = vector.extract_strided_slice %5 {offsets = [0, 0], sizes = [2, 128], strides = [1, 1]} : vector<16x128xf32> to vector<2x128xf32>
    %cst_9 = arith.constant dense<0.000000e+00> : vector<2x128xf32>
    %9 = tpu.matmul %7, %6, %cst_9 {dimension_numbers = #tpu.dot_dimension_numbers<[1], [0], [0], [1], [0, 0, 1, 1], [], []>} : vector<2x128xf32>, vector<128x128xf32>, vector<2x128xf32> -> vector<2x128xf32>
    %10 = arith.addf %8, %9 : vector<2x128xf32>
    %11 = math.tanh %10 : vector<2x128xf32>
    %12 = vector.extract_strided_slice %5 {offsets = [2, 0], sizes = [2, 128], strides = [1, 1]} : vector<16x128xf32> to vector<2x128xf32>
    %cst_10 = arith.constant dense<0.000000e+00> : vector<2x128xf32>
    %13 = tpu.matmul %11, %6, %cst_10 {dimension_numbers = #tpu.dot_dimension_numbers<[1], [0], [0], [1], [0, 0, 1, 1], [], []>} : vector<2x128xf32>, vector<128x128xf32>, vector<2x128xf32> -> vector<2x128xf32>
    %14 = arith.addf %12, %13 : vector<2x128xf32>
    %15 = math.tanh %14 : vector<2x128xf32>
    %16 = vector.extract_strided_slice %5 {offsets = [4, 0], sizes = [2, 128], strides = [1, 1]} : vector<16x128xf32> to vector<2x128xf32>
    %cst_11 = arith.constant dense<0.000000e+00> : vector<2x128xf32>
    %17 = tpu.matmul %15, %6, %cst_11 {dimension_numbers = #tpu.dot_dimension_numbers<[1], [0], [0], [1], [0, 0, 1, 1], [], []>} : vector<2x128xf32>, vector<128x128xf32>, vector<2x128xf32> -> vector<2x128xf32>
    %18 = arith.addf %16, %17 : vector<2x128xf32>
    %19 = math.tanh %18 : vector<2x128xf32>
    %20 = vector.extract_strided_slice %5 {offsets = [6, 0], sizes = [2, 128], strides = [1, 1]} : vector<16x128xf32> to vector<2x128xf32>
    %cst_12 = arith.constant dense<0.000000e+00> : vector<2x128xf32>
    %21 = tpu.matmul %19, %6, %cst_12 {dimension_numbers = #tpu.dot_dimension_numbers<[1], [0], [0], [1], [0, 0, 1, 1], [], []>} : vector<2x128xf32>, vector<128x128xf32>, vector<2x128xf32> -> vector<2x128xf32>
    %22 = arith.addf %20, %21 : vector<2x128xf32>
    %23 = math.tanh %22 : vector<2x128xf32>
    %24 = vector.extract_strided_slice %5 {offsets = [8, 0], sizes = [2, 128], strides = [1, 1]} : vector<16x128xf32> to vector<2x128xf32>
    %cst_13 = arith.constant dense<0.000000e+00> : vector<2x128xf32>
    %25 = tpu.matmul %23, %6, %cst_13 {dimension_numbers = #tpu.dot_dimension_numbers<[1], [0], [0], [1], [0, 0, 1, 1], [], []>} : vector<2x128xf32>, vector<128x128xf32>, vector<2x128xf32> -> vector<2x128xf32>
    %26 = arith.addf %24, %25 : vector<2x128xf32>
    %27 = math.tanh %26 : vector<2x128xf32>
    %28 = vector.extract_strided_slice %5 {offsets = [10, 0], sizes = [2, 128], strides = [1, 1]} : vector<16x128xf32> to vector<2x128xf32>
    %cst_14 = arith.constant dense<0.000000e+00> : vector<2x128xf32>
    %29 = tpu.matmul %27, %6, %cst_14 {dimension_numbers = #tpu.dot_dimension_numbers<[1], [0], [0], [1], [0, 0, 1, 1], [], []>} : vector<2x128xf32>, vector<128x128xf32>, vector<2x128xf32> -> vector<2x128xf32>
    %30 = arith.addf %28, %29 : vector<2x128xf32>
    %31 = math.tanh %30 : vector<2x128xf32>
    %32 = vector.extract_strided_slice %5 {offsets = [12, 0], sizes = [2, 128], strides = [1, 1]} : vector<16x128xf32> to vector<2x128xf32>
    %cst_15 = arith.constant dense<0.000000e+00> : vector<2x128xf32>
    %33 = tpu.matmul %31, %6, %cst_15 {dimension_numbers = #tpu.dot_dimension_numbers<[1], [0], [0], [1], [0, 0, 1, 1], [], []>} : vector<2x128xf32>, vector<128x128xf32>, vector<2x128xf32> -> vector<2x128xf32>
    %34 = arith.addf %32, %33 : vector<2x128xf32>
    %35 = math.tanh %34 : vector<2x128xf32>
    %36 = vector.extract_strided_slice %5 {offsets = [14, 0], sizes = [2, 128], strides = [1, 1]} : vector<16x128xf32> to vector<2x128xf32>
    %cst_16 = arith.constant dense<0.000000e+00> : vector<2x128xf32>
    %37 = tpu.matmul %35, %6, %cst_16 {dimension_numbers = #tpu.dot_dimension_numbers<[1], [0], [0], [1], [0, 0, 1, 1], [], []>} : vector<2x128xf32>, vector<128x128xf32>, vector<2x128xf32> -> vector<2x128xf32>
    %38 = arith.addf %36, %37 : vector<2x128xf32>
    %39 = math.tanh %38 : vector<2x128xf32>
    %c0_17 = arith.constant 0 : index
    %c0_18 = arith.constant 0 : index
    %40 = vector.load %arg9[%c0_17, %c0_18] : memref<2x128xf32, #tpu.memory_space<vmem>>, vector<2x128xf32>
    tpu.vector_store %arg9[%c0_17, %c0_18], %39 {strides = array<i32>} : memref<2x128xf32, #tpu.memory_space<vmem>>, vector<2x128xf32>,
    %c0_19 = arith.constant 0 : index
    %c0_20 = arith.constant 0 : index
    %41 = vector.load %arg6[%c0_19, %c0_20] : memref<128x8xf32, #tpu.memory_space<vmem>>, vector<128x8xf32>
    %cst_21 = arith.constant dense<0.000000e+00> : vector<2x8xf32>
    %42 = tpu.matmul %39, %41, %cst_21 {dimension_numbers = #tpu.dot_dimension_numbers<[1], [0], [0], [1], [0, 0, 1, 1], [], []>} : vector<2x128xf32>, vector<128x8xf32>, vector<2x8xf32> -> vector<2x8xf32>
    %c0_22 = arith.constant 0 : index
    %c0_23 = arith.constant 0 : index
    %43 = vector.load %arg7[%c0_22, %c0_23] : memref<1x8xf32, #tpu.memory_space<vmem>>, vector<1x8xf32>
    %44 = vector.broadcast %43 : vector<1x8xf32> to vector<2x8xf32>
    %45 = arith.addf %42, %44 : vector<2x8xf32>
    %c0_24 = arith.constant 0 : index
    %c0_25 = arith.constant 0 : index
    %46 = vector.load %arg8[%c0_24, %c0_25] : memref<2x8xf32, #tpu.memory_space<vmem>>, vector<2x8xf32>
    tpu.vector_store %arg8[%c0_24, %c0_25], %45 {strides = array<i32>} : memref<2x8xf32, #tpu.memory_space<vmem>>, vector<2x8xf32>,
    return
  }
  func.func @transform_0(%arg0: i32) -> (i32, i32) {
    %c0_i32 = arith.constant 0 : i32
    %c0_i32_0 = arith.constant 0 : i32
    %c0_i32_1 = arith.constant 0 : i32
    return %c0_i32, %c0_i32_0 : i32, i32
  }
  func.func @transform_1(%arg0: i32) -> (i32, i32) {
    %c0_i32 = arith.constant 0 : i32
    %c0_i32_0 = arith.constant 0 : i32
    %c0_i32_1 = arith.constant 0 : i32
    return %c0_i32, %c0_i32_0 : i32, i32
  }
  func.func @transform_2(%arg0: i32) -> (i32, i32) {
    %c0_i32 = arith.constant 0 : i32
    %c0_i32_0 = arith.constant 0 : i32
    %c0_i32_1 = arith.constant 0 : i32
    return %c0_i32, %c0_i32_0 : i32, i32
  }
  func.func @transform_3(%arg0: i32) -> (i32, i32) {
    %c0_i32 = arith.constant 0 : i32
    %c0_i32_0 = arith.constant 0 : i32
    %c0_i32_1 = arith.constant 0 : i32
    return %c0_i32, %c0_i32_0 : i32, i32
  }
  func.func @transform_4(%arg0: i32) -> (i32, i32) {
    %c0_i32 = arith.constant 0 : i32
    %c0_i32_0 = arith.constant 0 : i32
    %c0_i32_1 = arith.constant 0 : i32
    return %c0_i32, %c0_i32_0 : i32, i32
  }
  func.func @transform_5(%arg0: i32) -> (i32, i32) {
    %c0_i32 = arith.constant 0 : i32
    %c0_i32_0 = arith.constant 0 : i32
    %c0_i32_1 = arith.constant 0 : i32
    return %c0_i32, %c0_i32_0 : i32, i32
  }
  func.func @transform_6(%arg0: i32) -> (i32, i32) {
    %c0_i32 = arith.constant 0 : i32
    %c0_i32_0 = arith.constant 0 : i32
    %c0_i32_1 = arith.constant 0 : i32
    return %c0_i32, %c0_i32_0 : i32, i32
  }
  func.func @transform_7(%arg0: i32) -> (i32, i32) {
    %c0_i32 = arith.constant 0 : i32
    %c0_i32_0 = arith.constant 0 : i32
    %c0_i32_1 = arith.constant 0 : i32
    return %c0_i32, %c0_i32_0 : i32, i32
  }
  func.func @transform_8(%arg0: i32) -> (i32, i32) {
    %c0_i32 = arith.constant 0 : i32
    %c0_i32_0 = arith.constant 0 : i32
    %c0_i32_1 = arith.constant 0 : i32
    return %c0_i32, %c0_i32_0 : i32, i32
  }
}

</mosaic_0001>

<llo_original>
// kernel: tpu_custom_call.1
$region0: #{tpu_custom_call.1}
  #allocation0 [shape = 'u32[]', space=smem, size = 0x4, offset = 0x4, fixed_abs, tag = 'smem constant byte address 0x4 - core index']
  #allocation1 [shape = 'u32[144,128]{1,0:T(1,128)}', space=vmem, size = 0x12000, scoped, tag = 'internal scratch']
  %s0 = inlined_call_operand.hbm [shape: f32[16,16], index: 0, kind: input, shape index: {}]
  %s1 = inlined_call_operand.hbm [shape: f32[16,128], index: 1, kind: input, shape index: {}]
  %s2 = inlined_call_operand.vmem [shape: f32[128,128], index: 2, kind: input, shape index: {}]
  %s3 = inlined_call_operand.vmem [shape: f32[1,128], index: 3, kind: input, shape index: {}]
  %s4 = inlined_call_operand.vmem [shape: f32[2,128], index: 4, kind: input, shape index: {}]
  %s5 = inlined_call_operand.vmem [shape: f32[128,8], index: 5, kind: input, shape index: {}]
  %s6 = inlined_call_operand.vmem [shape: f32[1,8], index: 6, kind: input, shape index: {}]
  %s7 = inlined_call_operand.hbm [shape: f32[2,8], index: 7, kind: output, shape index: {0}]
  %s8 = inlined_call_operand.hbm [shape: f32[2,128], index: 8, kind: output, shape index: {1}]
  %9 = xla_tuple %s7, %s8
  %s10 = sld [smem:[#allocation0]]
  $region54: #{tpu_custom_call.1} parent=0
    _
  %s12 = ssub.s32 1, %s10
  %s13 = scalar_select 0, %s12, %s10
  $region1: #{tpu_custom_call.1} parent=0
    #allocation2 [shape = 'u8[8192]{0}', space=vmem, size = 0x2000, scoped, tag = 'input window, operand 0, single buffered']
    #allocation3 [shape = 's32[1]{0}', space=sflag, size = 0x4, scoped, tag = 'scoped memory for tpu_custom_call.1']
    #allocation4 [shape = 's32[1]{0}', space=sflag, size = 0x4, scoped, tag = 'scoped memory for tpu_custom_call.1']
    #allocation5 [shape = 'u8[8192]{0}', space=vmem, size = 0x2000, scoped, tag = 'input window, operand 1, single buffered']
    #allocation6 [shape = 's32[1]{0}', space=sflag, size = 0x4, scoped, tag = 'scoped memory for tpu_custom_call.1']
    #allocation7 [shape = 'u8[1024]{0}', space=vmem, size = 0x400, scoped, tag = 'output window, operand 0, single buffered']
    #allocation8 [shape = 'u8[1024]{0}', space=vmem, size = 0x400, scoped, tag = 'output window, operand 1, single buffered']
    #allocation9 [shape = 's32[1]{0}', space=sflag, size = 0x4, scoped, tag = 'scoped memory for tpu_custom_call.1']
    %14 = vsyncpa [#allocation3], 0
    %15 = vsyncpa [#allocation6], 0
    %16 = vsyncpa [#allocation4], 0
    %17 = vsyncpa [#allocation9], 0
    // Predicated region
    $region2: #{tpu_custom_call.1} parent=1 // pred_check
      _
    $region3: #{tpu_custom_call.1} parent=1 // pred_check_branch
      %19 = sbr.rel (0) target = $region5
    $region4: #{tpu_custom_call.1} parent=1 // pred_region
      %s21 = ssub.s32 256, 256
      %22 = vsyncadd [#allocation3], %s21
      %s23 = sshll.u32 [#allocation2], 4
      %s24 = int_to_ptr.vmem [resolvable:$true] %s23
      %29 = dma.hbm_to_vmem [thread:$0]  %s0, 256, %s24, [#allocation3], 128, 128, 8
    $region5: #{tpu_custom_call.1} parent=1 // pred_fallthru
      _
    // Predicated region
    $region6: #{tpu_custom_call.1} parent=1 // pred_check
      _
    $region7: #{tpu_custom_call.1} parent=1 // pred_check_branch
      %31 = sbr.rel (0) target = $region9
    $region8: #{tpu_custom_call.1} parent=1 // pred_region
      %s33 = ssub.s32 256, 256
      %34 = vsyncadd [#allocation6], %s33
      %s35 = sshll.u32 [#allocation5], 4
      %s36 = int_to_ptr.vmem [resolvable:$true] %s35
      %41 = dma.hbm_to_vmem [thread:$0]  %s1, 256, %s36, [#allocation6], 128, 128, 8
    $region9: #{tpu_custom_call.1} parent=1 // pred_fallthru
      _
    // Predicated region
    $region10: #{tpu_custom_call.1} parent=1 // pred_check
      _
    $region11: #{tpu_custom_call.1} parent=1 // pred_check_branch
      %43 = sbr.rel (0) target = $region13
    $region12: #{tpu_custom_call.1} parent=1 // pred_region
      _
    $region13: #{tpu_custom_call.1} parent=1 // pred_fallthru
      _
    // Predicated region
    $region14: #{tpu_custom_call.1} parent=1 // pred_check
      _
    $region15: #{tpu_custom_call.1} parent=1 // pred_check_branch
      %45 = sbr.rel (0) target = $region17
    $region16: #{tpu_custom_call.1} parent=1 // pred_region
      _
    $region17: #{tpu_custom_call.1} parent=1 // pred_fallthru
      _
    // Predicated region
    $region18: #{tpu_custom_call.1} parent=1 // pred_check
      _
    $region19: #{tpu_custom_call.1} parent=1 // pred_check_branch
      %47 = sbr.rel (0) target = $region21
    $region20: #{tpu_custom_call.1} parent=1 // pred_region
      _
    $region21: #{tpu_custom_call.1} parent=1 // pred_fallthru
      _
    // Predicated region
    $region22: #{tpu_custom_call.1} parent=1 // pred_check
      _
    $region23: #{tpu_custom_call.1} parent=1 // pred_check_branch
      %49 = sbr.rel (0) target = $region25
    $region24: #{tpu_custom_call.1} parent=1 // pred_region
      _
    $region25: #{tpu_custom_call.1} parent=1 // pred_fallthru
      _
    // Predicated region
    $region26: #{tpu_custom_call.1} parent=1 // pred_check
      _
    $region27: #{tpu_custom_call.1} parent=1 // pred_check_branch
      %51 = sbr.rel (0) target = $region29
    $region28: #{tpu_custom_call.1} parent=1 // pred_region
      _
    $region29: #{tpu_custom_call.1} parent=1 // pred_fallthru
      _
    // Predicated region
    $region30: #{tpu_custom_call.1} parent=1 // pred_check
      _
    $region31: #{tpu_custom_call.1} parent=1 // pred_check_branch
      %53 = sbr.rel (0) target = $region33
    $region32: #{tpu_custom_call.1} parent=1 // pred_region
      %54 = dma.done [#allocation3], 256
    $region33: #{tpu_custom_call.1} parent=1 // pred_fallthru
      _
    // Predicated region
    $region34: #{tpu_custom_call.1} parent=1 // pred_check
      _
    $region35: #{tpu_custom_call.1} parent=1 // pred_check_branch
      %56 = sbr.rel (0) target = $region37
    $region36: #{tpu_custom_call.1} parent=1 // pred_region
      %57 = dma.done [#allocation6], 256
    $region37: #{tpu_custom_call.1} parent=1 // pred_fallthru
      _
    %v58 = vld [vmem:[#allocation2] sm:$0xff]
    %v59 = vld [vmem:[#allocation2 + $0x8] sm:$0xff]
    %v60 = vld [vmem:[#allocation5] sm:$0xff]
    %v61 = vld [vmem:[#allocation5 + $0x8] sm:$0xff]
    %v62 = vld [vmem:[%s3] sm:$0x1]
    %v64 = vlaneseq
    %v65 = vshrl.u32 %v64, 7
    %v66 = vsub.s32 0, %v65
    %v67 = vrot.slane %v62, %v66
    %vm69 = vcmask 130048
    %v71 = vsel %vm69, %v58, 0
    %v74 = vsel %vm69, %v59, 0
    %76 = vmatprep.subr.mxu0 0.0
    %77 = vmatpush1.msra.mxu0 %v60
    %78 = vmatprep.subr.mxu0 0.0
    %79 = vmatpush1.msra.mxu0 %v61
    %80 = vmatprep.subr.mxu0 0.0
    %81 = vmatpush1.msra.mxu0 0.0
    %82 = vmatprep.subr.mxu0 0.0
    %83 = vmatpush1.msra.mxu0 0.0
    %84 = vmatprep.subr.mxu0 0.0
    %85 = vmatpush1.msra.mxu0 0.0
    %86 = vmatprep.subr.mxu0 0.0
    %87 = vmatpush1.msra.mxu0 0.0
    %88 = vmatprep.subr.mxu0 0.0
    %89 = vmatpush1.msra.mxu0 0.0
    %90 = vmatprep.subr.mxu0 0.0
    %91 = vmatpush1.msra.mxu0 0.0
    %92 = vmatprep.subr.mxu0 0.0
    %93 = vmatpush1.msra.mxu0 0.0
    %94 = vmatprep.subr.mxu0 0.0
    %95 = vmatpush1.msra.mxu0 0.0
    %96 = vmatprep.subr.mxu0 0.0
    %97 = vmatpush1.msra.mxu0 0.0
    %98 = vmatprep.subr.mxu0 0.0
    %99 = vmatpush1.msra.mxu0 0.0
    %100 = vmatprep.subr.mxu0 0.0
    %101 = vmatpush1.msra.mxu0 0.0
    %102 = vmatprep.subr.mxu0 0.0
    %103 = vmatpush1.msra.mxu0 0.0
    %104 = vmatprep.subr.mxu0 0.0
    %105 = vmatpush1.msra.mxu0 0.0
    %106 = vmatprep.subr.mxu0 0.0
    %107 = vmatpush1.msra.mxu0 0.0
    %108 = vmatprep.subr.mxu0 0.0
    %109 = vmatpush1.msra.mxu0 0.0
    %110 = vmatprep.subr.mxu0 0.0
    %111 = vmatpush1.msra.mxu0 0.0
    %112 = vmatprep.subr.mxu0 0.0
    %113 = vmatpush1.msra.mxu0 0.0
    %114 = vmatprep.subr.mxu0 0.0
    %115 = vmatpush1.msra.mxu0 0.0
    %116 = vmatprep.subr.mxu0 0.0
    %117 = vmatpush1.msra.mxu0 0.0
    %118 = vmatprep.subr.mxu0 0.0
    %119 = vmatpush1.msra.mxu0 0.0
    %120 = vmatprep.subr.mxu0 0.0
    %121 = vmatpush1.msra.mxu0 0.0
    %122 = vmatprep.subr.mxu0 0.0
    %123 = vmatpush1.msra.mxu0 0.0
    %124 = vmatprep.subr.mxu0 0.0
    %125 = vmatpush1.msra.mxu0 0.0
    %126 = vmatprep.subr.mxu0 0.0
    %127 = vmatpush1.msra.mxu0 0.0
    %128 = vmatprep.subr.mxu0 0.0
    %129 = vmatpush1.msra.mxu0 0.0
    %130 = vmatprep.subr.mxu0 0.0
    %131 = vmatpush1.msra.mxu0 0.0
    %132 = vmatprep.subr.mxu0 0.0
    %133 = vmatpush1.msra.mxu0 0.0
    %134 = vmatprep.subr.mxu0 0.0
    %135 = vmatpush1.msra.mxu0 0.0
    %136 = vmatprep.subr.mxu0 0.0
    %137 = vmatpush1.msra.mxu0 0.0
    %138 = vmatprep.subr.mxu0 0.0
    %139 = vmatpush1.msra.mxu0 0.0
    %140 = vmatprep.mubr.f32.mxu0 0.0
    %141 = vmatmul.mubr.f32.gmra.mrb[0].mxu0 %v71
    %v142 = vpop.f32.mrb[0].mxu0
    %v143 = vadd.f32 %v67, %v142
    %v144 = vpop.f32.mrb[0].mxu0
    %145 = vmatprep.mubr.f32.mxu0 0.0
    %146 = vmatmul.mubr.f32.gmra.mrb[0].mxu0 %v74
    %v147 = vpop.f32.mrb[0].mxu0
    %v148 = vadd.f32 %v67, %v147
    %v149 = vpop.f32.mrb[0].mxu0
    %150 = vdwg.mxu0
    %v151 = vld [vmem:[%s2] sm:$0xff]
    %v152 = vld [vmem:[%s2 + $0x8] sm:$0xff]
    %v153 = vld [vmem:[%s2 + $0x10] sm:$0xff]
    %v154 = vld [vmem:[%s2 + $0x18] sm:$0xff]
    %v155 = vld [vmem:[%s2 + $0x20] sm:$0xff]
    %v156 = vld [vmem:[%s2 + $0x28] sm:$0xff]
    %v157 = vld [vmem:[%s2 + $0x30] sm:$0xff]
    %v158 = vld [vmem:[%s2 + $0x38] sm:$0xff]
    %v159 = vld [vmem:[%s2 + $0x40] sm:$0xff]
    %v160 = vld [vmem:[%s2 + $0x48] sm:$0xff]
    %v161 = vld [vmem:[%s2 + $0x50] sm:$0xff]
    %v162 = vld [vmem:[%s2 + $0x58] sm:$0xff]
    %v163 = vld [vmem:[%s2 + $0x60] sm:$0xff]
    %v164 = vld [vmem:[%s2 + $0x68] sm:$0xff]
    %v165 = vld [vmem:[%s2 + $0x70] sm:$0xff]
    %v166 = vld [vmem:[%s2 + $0x78] sm:$0xff]
    %v167 = vld [vmem:[%s4] sm:$0x3]
    %168 = vmatprep.subr.mxu0 0.0
    %169 = vmatpush1.msra.mxu0 %v151
    %170 = vmatprep.subr.mxu0 0.0
    %171 = vmatpush1.msra.mxu0 %v152
    %172 = vmatprep.subr.mxu0 0.0
    %173 = vmatpush1.msra.mxu0 %v153
    %174 = vmatprep.subr.mxu0 0.0
    %175 = vmatpush1.msra.mxu0 %v154
    %176 = vmatprep.subr.mxu0 0.0
    %177 = vmatpush1.msra.mxu0 %v155
    %178 = vmatprep.subr.mxu0 0.0
    %179 = vmatpush1.msra.mxu0 %v156
    %180 = vmatprep.subr.mxu0 0.0
    %181 = vmatpush1.msra.mxu0 %v157
    %182 = vmatprep.subr.mxu0 0.0
    %183 = vmatpush1.msra.mxu0 %v158
    %184 = vmatprep.subr.mxu0 0.0
    %185 = vmatpush1.msra.mxu0 %v159
    %186 = vmatprep.subr.mxu0 0.0
    %187 = vmatpush1.msra.mxu0 %v160
    %188 = vmatprep.subr.mxu0 0.0
    %189 = vmatpush1.msra.mxu0 %v161
    %190 = vmatprep.subr.mxu0 0.0
    %191 = vmatpush1.msra.mxu0 %v162
    %192 = vmatprep.subr.mxu0 0.0
    %193 = vmatpush1.msra.mxu0 %v163
    %194 = vmatprep.subr.mxu0 0.0
    %195 = vmatpush1.msra.mxu0 %v164
    %196 = vmatprep.subr.mxu0 0.0
    %197 = vmatpush1.msra.mxu0 %v165
    %198 = vmatprep.subr.mxu0 0.0
    %199 = vmatpush1.msra.mxu0 %v166
    %200 = vmatprep.subr.mxu0 0.0
    %201 = vmatpush1.msra.mxu0 0.0
    %202 = vmatprep.subr.mxu0 0.0
    %203 = vmatpush1.msra.mxu0 0.0
    %204 = vmatprep.subr.mxu0 0.0
    %205 = vmatpush1.msra.mxu0 0.0
    %206 = vmatprep.subr.mxu0 0.0
    %207 = vmatpush1.msra.mxu0 0.0
    %208 = vmatprep.subr.mxu0 0.0
    %209 = vmatpush1.msra.mxu0 0.0
    %210 = vmatprep.subr.mxu0 0.0
    %211 = vmatpush1.msra.mxu0 0.0
    %212 = vmatprep.subr.mxu0 0.0
    %213 = vmatpush1.msra.mxu0 0.0
    %214 = vmatprep.subr.mxu0 0.0
    %215 = vmatpush1.msra.mxu0 0.0
    %216 = vmatprep.subr.mxu0 0.0
    %217 = vmatpush1.msra.mxu0 0.0
    %218 = vmatprep.subr.mxu0 0.0
    %219 = vmatpush1.msra.mxu0 0.0
    %220 = vmatprep.subr.mxu0 0.0
    %221 = vmatpush1.msra.mxu0 0.0
    %222 = vmatprep.subr.mxu0 0.0
    %223 = vmatpush1.msra.mxu0 0.0
    %224 = vmatprep.subr.mxu0 0.0
    %225 = vmatpush1.msra.mxu0 0.0
    %226 = vmatprep.subr.mxu0 0.0
    %227 = vmatpush1.msra.mxu0 0.0
    %228 = vmatprep.subr.mxu0 0.0
    %229 = vmatpush1.msra.mxu0 0.0
    %230 = vmatprep.subr.mxu0 0.0
    %231 = vmatpush1.msra.mxu0 0.0
    %232 = vmatprep.mubr.f32.mxu0 0.0
    %233 = vmatmul.mubr.f32.gmra.mrb[0].mxu0 %v167
    %v234 = vpop.f32.mrb[0].mxu0
    %v235 = vadd.f32 0.0, %v234
    %v236 = vpop.f32.mrb[0].mxu0
    %237 = vdwg.mxu0
    %v238 = vadd.f32 %v143, %v235
    %v239 = vtanh.pop %v238
    %240 = vmatprep.subr.mxu0 0.0
    %241 = vmatpush1.msra.mxu0 %v151
    %242 = vmatprep.subr.mxu0 0.0
    %243 = vmatpush1.msra.mxu0 %v152
    %244 = vmatprep.subr.mxu0 0.0
    %245 = vmatpush1.msra.mxu0 %v153
    %246 = vmatprep.subr.mxu0 0.0
    %247 = vmatpush1.msra.mxu0 %v154
    %248 = vmatprep.subr.mxu0 0.0
    %249 = vmatpush1.msra.mxu0 %v155
    %250 = vmatprep.subr.mxu0 0.0
    %251 = vmatpush1.msra.mxu0 %v156
    %252 = vmatprep.subr.mxu0 0.0
    %253 = vmatpush1.msra.mxu0 %v157
    %254 = vmatprep.subr.mxu0 0.0
    %255 = vmatpush1.msra.mxu0 %v158
    %256 = vmatprep.subr.mxu0 0.0
    %257 = vmatpush1.msra.mxu0 %v159
    %258 = vmatprep.subr.mxu0 0.0
    %259 = vmatpush1.msra.mxu0 %v160
    %260 = vmatprep.subr.mxu0 0.0
    %261 = vmatpush1.msra.mxu0 %v161
    %262 = vmatprep.subr.mxu0 0.0
    %263 = vmatpush1.msra.mxu0 %v162
    %264 = vmatprep.subr.mxu0 0.0
    %265 = vmatpush1.msra.mxu0 %v163
    %266 = vmatprep.subr.mxu0 0.0
    %267 = vmatpush1.msra.mxu0 %v164
    %268 = vmatprep.subr.mxu0 0.0
    %269 = vmatpush1.msra.mxu0 %v165
    %270 = vmatprep.subr.mxu0 0.0
    %271 = vmatpush1.msra.mxu0 %v166
    %272 = vmatprep.subr.mxu0 0.0
    %273 = vmatpush1.msra.mxu0 0.0
    %274 = vmatprep.subr.mxu0 0.0
    %275 = vmatpush1.msra.mxu0 0.0
    %276 = vmatprep.subr.mxu0 0.0
    %277 = vmatpush1.msra.mxu0 0.0
    %278 = vmatprep.subr.mxu0 0.0
    %279 = vmatpush1.msra.mxu0 0.0
    %280 = vmatprep.subr.mxu0 0.0
    %281 = vmatpush1.msra.mxu0 0.0
    %282 = vmatprep.subr.mxu0 0.0
    %283 = vmatpush1.msra.mxu0 0.0
    %284 = vmatprep.subr.mxu0 0.0
    %285 = vmatpush1.msra.mxu0 0.0
    %286 = vmatprep.subr.mxu0 0.0
    %287 = vmatpush1.msra.mxu0 0.0
    %288 = vmatprep.subr.mxu0 0.0
    %289 = vmatpush1.msra.mxu0 0.0
    %290 = vmatprep.subr.mxu0 0.0
    %291 = vmatpush1.msra.mxu0 0.0
    %292 = vmatprep.subr.mxu0 0.0
    %293 = vmatpush1.msra.mxu0 0.0
    %294 = vmatprep.subr.mxu0 0.0
    %295 = vmatpush1.msra.mxu0 0.0
    %296 = vmatprep.subr.mxu0 0.0
    %297 = vmatpush1.msra.mxu0 0.0
    %298 = vmatprep.subr.mxu0 0.0
    %299 = vmatpush1.msra.mxu0 0.0
    %300 = vmatprep.subr.mxu0 0.0
    %301 = vmatpush1.msra.mxu0 0.0
    %302 = vmatprep.subr.mxu0 0.0
    %303 = vmatpush1.msra.mxu0 0.0
    %304 = vmatprep.mubr.f32.mxu0 0.0
    %305 = vmatmul.mubr.f32.gmra.mrb[0].mxu0 %v239
    %v306 = vpop.f32.mrb[0].mxu0
    %v307 = vadd.f32 0.0, %v306
    %v308 = vpop.f32.mrb[0].mxu0
    %309 = vdwg.mxu0
    %v311 = vrot.slane %v307, 6
    %v313 = vadd.f32 %v143, %v311
    %v314 = vtanh.pop %v313
    %v316 = vrot.slane %v314, 2
    %318 = vmatprep.subr.mxu0 0.0
    %319 = vmatpush1.msra.mxu0 %v151
    %320 = vmatprep.subr.mxu0 0.0
    %321 = vmatpush1.msra.mxu0 %v152
    %322 = vmatprep.subr.mxu0 0.0
    %323 = vmatpush1.msra.mxu0 %v153
    %324 = vmatprep.subr.mxu0 0.0
    %325 = vmatpush1.msra.mxu0 %v154
    %326 = vmatprep.subr.mxu0 0.0
    %327 = vmatpush1.msra.mxu0 %v155
    %328 = vmatprep.subr.mxu0 0.0
    %329 = vmatpush1.msra.mxu0 %v156
    %330 = vmatprep.subr.mxu0 0.0
    %331 = vmatpush1.msra.mxu0 %v157
    %332 = vmatprep.subr.mxu0 0.0
    %333 = vmatpush1.msra.mxu0 %v158
    %334 = vmatprep.subr.mxu0 0.0
    %335 = vmatpush1.msra.mxu0 %v159
    %336 = vmatprep.subr.mxu0 0.0
    %337 = vmatpush1.msra.mxu0 %v160
    %338 = vmatprep.subr.mxu0 0.0
    %339 = vmatpush1.msra.mxu0 %v161
    %340 = vmatprep.subr.mxu0 0.0
    %341 = vmatpush1.msra.mxu0 %v162
    %342 = vmatprep.subr.mxu0 0.0
    %343 = vmatpush1.msra.mxu0 %v163
    %344 = vmatprep.subr.mxu0 0.0
    %345 = vmatpush1.msra.mxu0 %v164
    %346 = vmatprep.subr.mxu0 0.0
    %347 = vmatpush1.msra.mxu0 %v165
    %348 = vmatprep.subr.mxu0 0.0
    %349 = vmatpush1.msra.mxu0 %v166
    %350 = vmatprep.subr.mxu0 0.0
    %351 = vmatpush1.msra.mxu0 0.0
    %352 = vmatprep.subr.mxu0 0.0
    %353 = vmatpush1.msra.mxu0 0.0
    %354 = vmatprep.subr.mxu0 0.0
    %355 = vmatpush1.msra.mxu0 0.0
    %356 = vmatprep.subr.mxu0 0.0
    %357 = vmatpush1.msra.mxu0 0.0
    %358 = vmatprep.subr.mxu0 0.0
    %359 = vmatpush1.msra.mxu0 0.0
    %360 = vmatprep.subr.mxu0 0.0
    %361 = vmatpush1.msra.mxu0 0.0
    %362 = vmatprep.subr.mxu0 0.0
    %363 = vmatpush1.msra.mxu0 0.0
    %364 = vmatprep.subr.mxu0 0.0
    %365 = vmatpush1.msra.mxu0 0.0
    %366 = vmatprep.subr.mxu0 0.0
    %367 = vmatpush1.msra.mxu0 0.0
    %368 = vmatprep.subr.mxu0 0.0
    %369 = vmatpush1.msra.mxu0 0.0
    %370 = vmatprep.subr.mxu0 0.0
    %371 = vmatpush1.msra.mxu0 0.0
    %372 = vmatprep.subr.mxu0 0.0
    %373 = vmatpush1.msra.mxu0 0.0
    %374 = vmatprep.subr.mxu0 0.0
    %375 = vmatpush1.msra.mxu0 0.0
    %376 = vmatprep.subr.mxu0 0.0
    %377 = vmatpush1.msra.mxu0 0.0
    %378 = vmatprep.subr.mxu0 0.0
    %379 = vmatpush1.msra.mxu0 0.0
    %380 = vmatprep.subr.mxu0 0.0
    %381 = vmatpush1.msra.mxu0 0.0
    %382 = vmatprep.mubr.f32.mxu0 0.0
    %383 = vmatmul.mubr.f32.gmra.mrb[0].mxu0 %v316
    %v384 = vpop.f32.mrb[0].mxu0
    %v385 = vadd.f32 0.0, %v384
    %v386 = vpop.f32.mrb[0].mxu0
    %387 = vdwg.mxu0
    %v389 = vrot.slane %v385, 4
    %v391 = vadd.f32 %v143, %v389
    %v392 = vtanh.pop %v391
    %v394 = vrot.slane %v392, 4
    %396 = vmatprep.subr.mxu0 0.0
    %397 = vmatpush1.msra.mxu0 %v151
    %398 = vmatprep.subr.mxu0 0.0
    %399 = vmatpush1.msra.mxu0 %v152
    %400 = vmatprep.subr.mxu0 0.0
    %401 = vmatpush1.msra.mxu0 %v153
    %402 = vmatprep.subr.mxu0 0.0
    %403 = vmatpush1.msra.mxu0 %v154
    %404 = vmatprep.subr.mxu0 0.0
    %405 = vmatpush1.msra.mxu0 %v155
    %406 = vmatprep.subr.mxu0 0.0
    %407 = vmatpush1.msra.mxu0 %v156
    %408 = vmatprep.subr.mxu0 0.0
    %409 = vmatpush1.msra.mxu0 %v157
    %410 = vmatprep.subr.mxu0 0.0
    %411 = vmatpush1.msra.mxu0 %v158
    %412 = vmatprep.subr.mxu0 0.0
    %413 = vmatpush1.msra.mxu0 %v159
    %414 = vmatprep.subr.mxu0 0.0
    %415 = vmatpush1.msra.mxu0 %v160
    %416 = vmatprep.subr.mxu0 0.0
    %417 = vmatpush1.msra.mxu0 %v161
    %418 = vmatprep.subr.mxu0 0.0
    %419 = vmatpush1.msra.mxu0 %v162
    %420 = vmatprep.subr.mxu0 0.0
    %421 = vmatpush1.msra.mxu0 %v163
    %422 = vmatprep.subr.mxu0 0.0
    %423 = vmatpush1.msra.mxu0 %v164
    %424 = vmatprep.subr.mxu0 0.0
    %425 = vmatpush1.msra.mxu0 %v165
    %426 = vmatprep.subr.mxu0 0.0
    %427 = vmatpush1.msra.mxu0 %v166
    %428 = vmatprep.subr.mxu0 0.0
    %429 = vmatpush1.msra.mxu0 0.0
    %430 = vmatprep.subr.mxu0 0.0
    %431 = vmatpush1.msra.mxu0 0.0
    %432 = vmatprep.subr.mxu0 0.0
    %433 = vmatpush1.msra.mxu0 0.0
    %434 = vmatprep.subr.mxu0 0.0
    %435 = vmatpush1.msra.mxu0 0.0
    %436 = vmatprep.subr.mxu0 0.0
    %437 = vmatpush1.msra.mxu0 0.0
    %438 = vmatprep.subr.mxu0 0.0
    %439 = vmatpush1.msra.mxu0 0.0
    %440 = vmatprep.subr.mxu0 0.0
    %441 = vmatpush1.msra.mxu0 0.0
    %442 = vmatprep.subr.mxu0 0.0
    %443 = vmatpush1.msra.mxu0 0.0
    %444 = vmatprep.subr.mxu0 0.0
    %445 = vmatpush1.msra.mxu0 0.0
    %446 = vmatprep.subr.mxu0 0.0
    %447 = vmatpush1.msra.mxu0 0.0
    %448 = vmatprep.subr.mxu0 0.0
    %449 = vmatpush1.msra.mxu0 0.0
    %450 = vmatprep.subr.mxu0 0.0
    %451 = vmatpush1.msra.mxu0 0.0
    %452 = vmatprep.subr.mxu0 0.0
    %453 = vmatpush1.msra.mxu0 0.0
    %454 = vmatprep.subr.mxu0 0.0
    %455 = vmatpush1.msra.mxu0 0.0
    %456 = vmatprep.subr.mxu0 0.0
    %457 = vmatpush1.msra.mxu0 0.0
    %458 = vmatprep.subr.mxu0 0.0
    %459 = vmatpush1.msra.mxu0 0.0
    %460 = vmatprep.mubr.f32.mxu0 0.0
    %461 = vmatmul.mubr.f32.gmra.mrb[0].mxu0 %v394
    %v462 = vpop.f32.mrb[0].mxu0
    %v463 = vadd.f32 0.0, %v462
    %v464 = vpop.f32.mrb[0].mxu0
    %465 = vdwg.mxu0
    %v467 = vrot.slane %v463, 2
    %v469 = vadd.f32 %v143, %v467
    %v470 = vtanh.pop %v469
    %v472 = vrot.slane %v470, 6
    %474 = vmatprep.subr.mxu0 0.0
    %475 = vmatpush1.msra.mxu0 %v151
    %476 = vmatprep.subr.mxu0 0.0
    %477 = vmatpush1.msra.mxu0 %v152
    %478 = vmatprep.subr.mxu0 0.0
    %479 = vmatpush1.msra.mxu0 %v153
    %480 = vmatprep.subr.mxu0 0.0
    %481 = vmatpush1.msra.mxu0 %v154
    %482 = vmatprep.subr.mxu0 0.0
    %483 = vmatpush1.msra.mxu0 %v155
    %484 = vmatprep.subr.mxu0 0.0
    %485 = vmatpush1.msra.mxu0 %v156
    %486 = vmatprep.subr.mxu0 0.0
    %487 = vmatpush1.msra.mxu0 %v157
    %488 = vmatprep.subr.mxu0 0.0
    %489 = vmatpush1.msra.mxu0 %v158
    %490 = vmatprep.subr.mxu0 0.0
    %491 = vmatpush1.msra.mxu0 %v159
    %492 = vmatprep.subr.mxu0 0.0
    %493 = vmatpush1.msra.mxu0 %v160
    %494 = vmatprep.subr.mxu0 0.0
    %495 = vmatpush1.msra.mxu0 %v161
    %496 = vmatprep.subr.mxu0 0.0
    %497 = vmatpush1.msra.mxu0 %v162
    %498 = vmatprep.subr.mxu0 0.0
    %499 = vmatpush1.msra.mxu0 %v163
    %500 = vmatprep.subr.mxu0 0.0
    %501 = vmatpush1.msra.mxu0 %v164
    %502 = vmatprep.subr.mxu0 0.0
    %503 = vmatpush1.msra.mxu0 %v165
    %504 = vmatprep.subr.mxu0 0.0
    %505 = vmatpush1.msra.mxu0 %v166
    %506 = vmatprep.subr.mxu0 0.0
    %507 = vmatpush1.msra.mxu0 0.0
    %508 = vmatprep.subr.mxu0 0.0
    %509 = vmatpush1.msra.mxu0 0.0
    %510 = vmatprep.subr.mxu0 0.0
    %511 = vmatpush1.msra.mxu0 0.0
    %512 = vmatprep.subr.mxu0 0.0
    %513 = vmatpush1.msra.mxu0 0.0
    %514 = vmatprep.subr.mxu0 0.0
    %515 = vmatpush1.msra.mxu0 0.0
    %516 = vmatprep.subr.mxu0 0.0
    %517 = vmatpush1.msra.mxu0 0.0
    %518 = vmatprep.subr.mxu0 0.0
    %519 = vmatpush1.msra.mxu0 0.0
    %520 = vmatprep.subr.mxu0 0.0
    %521 = vmatpush1.msra.mxu0 0.0
    %522 = vmatprep.subr.mxu0 0.0
    %523 = vmatpush1.msra.mxu0 0.0
    %524 = vmatprep.subr.mxu0 0.0
    %525 = vmatpush1.msra.mxu0 0.0
    %526 = vmatprep.subr.mxu0 0.0
    %527 = vmatpush1.msra.mxu0 0.0
    %528 = vmatprep.subr.mxu0 0.0
    %529 = vmatpush1.msra.mxu0 0.0
    %530 = vmatprep.subr.mxu0 0.0
    %531 = vmatpush1.msra.mxu0 0.0
    %532 = vmatprep.subr.mxu0 0.0
    %533 = vmatpush1.msra.mxu0 0.0
    %534 = vmatprep.subr.mxu0 0.0
    %535 = vmatpush1.msra.mxu0 0.0
    %536 = vmatprep.subr.mxu0 0.0
    %537 = vmatpush1.msra.mxu0 0.0
    %538 = vmatprep.mubr.f32.mxu0 0.0
    %539 = vmatmul.mubr.f32.gmra.mrb[0].mxu0 %v472
    %v540 = vpop.f32.mrb[0].mxu0
    %v541 = vadd.f32 0.0, %v540
    %v542 = vpop.f32.mrb[0].mxu0
    %543 = vdwg.mxu0
    %v544 = vadd.f32 %v148, %v541
    %v545 = vtanh.pop %v544
    %546 = vmatprep.subr.mxu0 0.0
    %547 = vmatpush1.msra.mxu0 %v151
    %548 = vmatprep.subr.mxu0 0.0
    %549 = vmatpush1.msra.mxu0 %v152
    %550 = vmatprep.subr.mxu0 0.0
    %551 = vmatpush1.msra.mxu0 %v153
    %552 = vmatprep.subr.mxu0 0.0
    %553 = vmatpush1.msra.mxu0 %v154
    %554 = vmatprep.subr.mxu0 0.0
    %555 = vmatpush1.msra.mxu0 %v155
    %556 = vmatprep.subr.mxu0 0.0
    %557 = vmatpush1.msra.mxu0 %v156
    %558 = vmatprep.subr.mxu0 0.0
    %559 = vmatpush1.msra.mxu0 %v157
    %560 = vmatprep.subr.mxu0 0.0
    %561 = vmatpush1.msra.mxu0 %v158
    %562 = vmatprep.subr.mxu0 0.0
    %563 = vmatpush1.msra.mxu0 %v159
    %564 = vmatprep.subr.mxu0 0.0
    %565 = vmatpush1.msra.mxu0 %v160
    %566 = vmatprep.subr.mxu0 0.0
    %567 = vmatpush1.msra.mxu0 %v161
    %568 = vmatprep.subr.mxu0 0.0
    %569 = vmatpush1.msra.mxu0 %v162
    %570 = vmatprep.subr.mxu0 0.0
    %571 = vmatpush1.msra.mxu0 %v163
    %572 = vmatprep.subr.mxu0 0.0
    %573 = vmatpush1.msra.mxu0 %v164
    %574 = vmatprep.subr.mxu0 0.0
    %575 = vmatpush1.msra.mxu0 %v165
    %576 = vmatprep.subr.mxu0 0.0
    %577 = vmatpush1.msra.mxu0 %v166
    %578 = vmatprep.subr.mxu0 0.0
    %579 = vmatpush1.msra.mxu0 0.0
    %580 = vmatprep.subr.mxu0 0.0
    %581 = vmatpush1.msra.mxu0 0.0
    %582 = vmatprep.subr.mxu0 0.0
    %583 = vmatpush1.msra.mxu0 0.0
    %584 = vmatprep.subr.mxu0 0.0
    %585 = vmatpush1.msra.mxu0 0.0
    %586 = vmatprep.subr.mxu0 0.0
    %587 = vmatpush1.msra.mxu0 0.0
    %588 = vmatprep.subr.mxu0 0.0
    %589 = vmatpush1.msra.mxu0 0.0
    %590 = vmatprep.subr.mxu0 0.0
    %591 = vmatpush1.msra.mxu0 0.0
    %592 = vmatprep.subr.mxu0 0.0
    %593 = vmatpush1.msra.mxu0 0.0
    %594 = vmatprep.subr.mxu0 0.0
    %595 = vmatpush1.msra.mxu0 0.0
    %596 = vmatprep.subr.mxu0 0.0
    %597 = vmatpush1.msra.mxu0 0.0
    %598 = vmatprep.subr.mxu0 0.0
    %599 = vmatpush1.msra.mxu0 0.0
    %600 = vmatprep.subr.mxu0 0.0
    %601 = vmatpush1.msra.mxu0 0.0
    %602 = vmatprep.subr.mxu0 0.0
    %603 = vmatpush1.msra.mxu0 0.0
    %604 = vmatprep.subr.mxu0 0.0
    %605 = vmatpush1.msra.mxu0 0.0
    %606 = vmatprep.subr.mxu0 0.0
    %607 = vmatpush1.msra.mxu0 0.0
    %608 = vmatprep.subr.mxu0 0.0
    %609 = vmatpush1.msra.mxu0 0.0
    %610 = vmatprep.mubr.f32.mxu0 0.0
    %611 = vmatmul.mubr.f32.gmra.mrb[0].mxu0 %v545
    %v612 = vpop.f32.mrb[0].mxu0
    %v613 = vadd.f32 0.0, %v612
    %v614 = vpop.f32.mrb[0].mxu0
    %615 = vdwg.mxu0
    %v617 = vrot.slane %v613, 6
    %v619 = vadd.f32 %v148, %v617
    %v620 = vtanh.pop %v619
    %v622 = vrot.slane %v620, 2
    %624 = vmatprep.subr.mxu0 0.0
    %625 = vmatpush1.msra.mxu0 %v151
    %626 = vmatprep.subr.mxu0 0.0
    %627 = vmatpush1.msra.mxu0 %v152
    %628 = vmatprep.subr.mxu0 0.0
    %629 = vmatpush1.msra.mxu0 %v153
    %630 = vmatprep.subr.mxu0 0.0
    %631 = vmatpush1.msra.mxu0 %v154
    %632 = vmatprep.subr.mxu0 0.0
    %633 = vmatpush1.msra.mxu0 %v155
    %634 = vmatprep.subr.mxu0 0.0
    %635 = vmatpush1.msra.mxu0 %v156
    %636 = vmatprep.subr.mxu0 0.0
    %637 = vmatpush1.msra.mxu0 %v157
    %638 = vmatprep.subr.mxu0 0.0
    %639 = vmatpush1.msra.mxu0 %v158
    %640 = vmatprep.subr.mxu0 0.0
    %641 = vmatpush1.msra.mxu0 %v159
    %642 = vmatprep.subr.mxu0 0.0
    %643 = vmatpush1.msra.mxu0 %v160
    %644 = vmatprep.subr.mxu0 0.0
    %645 = vmatpush1.msra.mxu0 %v161
    %646 = vmatprep.subr.mxu0 0.0
    %647 = vmatpush1.msra.mxu0 %v162
    %648 = vmatprep.subr.mxu0 0.0
    %649 = vmatpush1.msra.mxu0 %v163
    %650 = vmatprep.subr.mxu0 0.0
    %651 = vmatpush1.msra.mxu0 %v164
    %652 = vmatprep.subr.mxu0 0.0
    %653 = vmatpush1.msra.mxu0 %v165
    %654 = vmatprep.subr.mxu0 0.0
    %655 = vmatpush1.msra.mxu0 %v166
    %656 = vmatprep.subr.mxu0 0.0
    %657 = vmatpush1.msra.mxu0 0.0
    %658 = vmatprep.subr.mxu0 0.0
    %659 = vmatpush1.msra.mxu0 0.0
    %660 = vmatprep.subr.mxu0 0.0
    %661 = vmatpush1.msra.mxu0 0.0
    %662 = vmatprep.subr.mxu0 0.0
    %663 = vmatpush1.msra.mxu0 0.0
    %664 = vmatprep.subr.mxu0 0.0
    %665 = vmatpush1.msra.mxu0 0.0
    %666 = vmatprep.subr.mxu0 0.0
    %667 = vmatpush1.msra.mxu0 0.0
    %668 = vmatprep.subr.mxu0 0.0
    %669 = vmatpush1.msra.mxu0 0.0
    %670 = vmatprep.subr.mxu0 0.0
    %671 = vmatpush1.msra.mxu0 0.0
    %672 = vmatprep.subr.mxu0 0.0
    %673 = vmatpush1.msra.mxu0 0.0
    %674 = vmatprep.subr.mxu0 0.0
    %675 = vmatpush1.msra.mxu0 0.0
    %676 = vmatprep.subr.mxu0 0.0
    %677 = vmatpush1.msra.mxu0 0.0
    %678 = vmatprep.subr.mxu0 0.0
    %679 = vmatpush1.msra.mxu0 0.0
    %680 = vmatprep.subr.mxu0 0.0
    %681 = vmatpush1.msra.mxu0 0.0
    %682 = vmatprep.subr.mxu0 0.0
    %683 = vmatpush1.msra.mxu0 0.0
    %684 = vmatprep.subr.mxu0 0.0
    %685 = vmatpush1.msra.mxu0 0.0
    %686 = vmatprep.subr.mxu0 0.0
    %687 = vmatpush1.msra.mxu0 0.0
    %688 = vmatprep.mubr.f32.mxu0 0.0
    %689 = vmatmul.mubr.f32.gmra.mrb[0].mxu0 %v622
    %v690 = vpop.f32.mrb[0].mxu0
    %v691 = vadd.f32 0.0, %v690
    %v692 = vpop.f32.mrb[0].mxu0
    %693 = vdwg.mxu0
    %v695 = vrot.slane %v691, 4
    %v697 = vadd.f32 %v148, %v695
    %v698 = vtanh.pop %v697
    %v700 = vrot.slane %v698, 4
    %702 = vmatprep.subr.mxu0 0.0
    %703 = vmatpush1.msra.mxu0 %v151
    %704 = vmatprep.subr.mxu0 0.0
    %705 = vmatpush1.msra.mxu0 %v152
    %706 = vmatprep.subr.mxu0 0.0
    %707 = vmatpush1.msra.mxu0 %v153
    %708 = vmatprep.subr.mxu0 0.0
    %709 = vmatpush1.msra.mxu0 %v154
    %710 = vmatprep.subr.mxu0 0.0
    %711 = vmatpush1.msra.mxu0 %v155
    %712 = vmatprep.subr.mxu0 0.0
    %713 = vmatpush1.msra.mxu0 %v156
    %714 = vmatprep.subr.mxu0 0.0
    %715 = vmatpush1.msra.mxu0 %v157
    %716 = vmatprep.subr.mxu0 0.0
    %717 = vmatpush1.msra.mxu0 %v158
    %718 = vmatprep.subr.mxu0 0.0
    %719 = vmatpush1.msra.mxu0 %v159
    %720 = vmatprep.subr.mxu0 0.0
    %721 = vmatpush1.msra.mxu0 %v160
    %722 = vmatprep.subr.mxu0 0.0
    %723 = vmatpush1.msra.mxu0 %v161
    %724 = vmatprep.subr.mxu0 0.0
    %725 = vmatpush1.msra.mxu0 %v162
    %726 = vmatprep.subr.mxu0 0.0
    %727 = vmatpush1.msra.mxu0 %v163
    %728 = vmatprep.subr.mxu0 0.0
    %729 = vmatpush1.msra.mxu0 %v164
    %730 = vmatprep.subr.mxu0 0.0
    %731 = vmatpush1.msra.mxu0 %v165
    %732 = vmatprep.subr.mxu0 0.0
    %733 = vmatpush1.msra.mxu0 %v166
    %734 = vmatprep.subr.mxu0 0.0
    %735 = vmatpush1.msra.mxu0 0.0
    %736 = vmatprep.subr.mxu0 0.0
    %737 = vmatpush1.msra.mxu0 0.0
    %738 = vmatprep.subr.mxu0 0.0
    %739 = vmatpush1.msra.mxu0 0.0
    %740 = vmatprep.subr.mxu0 0.0
    %741 = vmatpush1.msra.mxu0 0.0
    %742 = vmatprep.subr.mxu0 0.0
    %743 = vmatpush1.msra.mxu0 0.0
    %744 = vmatprep.subr.mxu0 0.0
    %745 = vmatpush1.msra.mxu0 0.0
    %746 = vmatprep.subr.mxu0 0.0
    %747 = vmatpush1.msra.mxu0 0.0
    %748 = vmatprep.subr.mxu0 0.0
    %749 = vmatpush1.msra.mxu0 0.0
    %750 = vmatprep.subr.mxu0 0.0
    %751 = vmatpush1.msra.mxu0 0.0
    %752 = vmatprep.subr.mxu0 0.0
    %753 = vmatpush1.msra.mxu0 0.0
    %754 = vmatprep.subr.mxu0 0.0
    %755 = vmatpush1.msra.mxu0 0.0
    %756 = vmatprep.subr.mxu0 0.0
    %757 = vmatpush1.msra.mxu0 0.0
    %758 = vmatprep.subr.mxu0 0.0
    %759 = vmatpush1.msra.mxu0 0.0
    %760 = vmatprep.subr.mxu0 0.0
    %761 = vmatpush1.msra.mxu0 0.0
    %762 = vmatprep.subr.mxu0 0.0
    %763 = vmatpush1.msra.mxu0 0.0
    %764 = vmatprep.subr.mxu0 0.0
    %765 = vmatpush1.msra.mxu0 0.0
    %766 = vmatprep.mubr.f32.mxu0 0.0
    %767 = vmatmul.mubr.f32.gmra.mrb[0].mxu0 %v700
    %v768 = vpop.f32.mrb[0].mxu0
    %v769 = vadd.f32 0.0, %v768
    %v770 = vpop.f32.mrb[0].mxu0
    %771 = vdwg.mxu0
    %v773 = vrot.slane %v769, 2
    %v775 = vadd.f32 %v148, %v773
    %v776 = vtanh.pop %v775
    %777 = vst [vmem:[#allocation8 - $0x6] sm:$0xc0] %v776
    %v778 = vld [vmem:[%s5] sm:$0xff]
    %v779 = vld [vmem:[%s5 + $0x8] sm:$0xff]
    %v780 = vld [vmem:[%s5 + $0x10] sm:$0xff]
    %v781 = vld [vmem:[%s5 + $0x18] sm:$0xff]
    %v782 = vld [vmem:[%s5 + $0x20] sm:$0xff]
    %v783 = vld [vmem:[%s5 + $0x28] sm:$0xff]
    %v784 = vld [vmem:[%s5 + $0x30] sm:$0xff]
    %v785 = vld [vmem:[%s5 + $0x38] sm:$0xff]
    %v786 = vld [vmem:[%s5 + $0x40] sm:$0xff]
    %v787 = vld [vmem:[%s5 + $0x48] sm:$0xff]
    %v788 = vld [vmem:[%s5 + $0x50] sm:$0xff]
    %v789 = vld [vmem:[%s5 + $0x58] sm:$0xff]
    %v790 = vld [vmem:[%s5 + $0x60] sm:$0xff]
    %v791 = vld [vmem:[%s5 + $0x68] sm:$0xff]
    %v792 = vld [vmem:[%s5 + $0x70] sm:$0xff]
    %v793 = vld [vmem:[%s5 + $0x78] sm:$0xff]
    %v794 = vld [vmem:[%s6] sm:$0x1]
    %v796 = vlaneseq
    %v797 = vshrl.u32 %v796, 7
    %v798 = vsub.s32 0, %v797
    %v799 = vrot.slane %v794, %v798
    %v802 = vrot.slane %v776, 6
    %804 = vmatprep.subr.mxu0 0.0
    %805 = vmatpush1.msra.mxu0 %v778
    %806 = vmatprep.subr.mxu0 0.0
    %807 = vmatpush1.msra.mxu0 %v779
    %808 = vmatprep.subr.mxu0 0.0
    %809 = vmatpush1.msra.mxu0 %v780
    %810 = vmatprep.subr.mxu0 0.0
    %811 = vmatpush1.msra.mxu0 %v781
    %812 = vmatprep.subr.mxu0 0.0
    %813 = vmatpush1.msra.mxu0 %v782
    %814 = vmatprep.subr.mxu0 0.0
    %815 = vmatpush1.msra.mxu0 %v783
    %816 = vmatprep.subr.mxu0 0.0
    %817 = vmatpush1.msra.mxu0 %v784
    %818 = vmatprep.subr.mxu0 0.0
    %819 = vmatpush1.msra.mxu0 %v785
    %820 = vmatprep.subr.mxu0 0.0
    %821 = vmatpush1.msra.mxu0 %v786
    %822 = vmatprep.subr.mxu0 0.0
    %823 = vmatpush1.msra.mxu0 %v787
    %824 = vmatprep.subr.mxu0 0.0
    %825 = vmatpush1.msra.mxu0 %v788
    %826 = vmatprep.subr.mxu0 0.0
    %827 = vmatpush1.msra.mxu0 %v789
    %828 = vmatprep.subr.mxu0 0.0
    %829 = vmatpush1.msra.mxu0 %v790
    %830 = vmatprep.subr.mxu0 0.0
    %831 = vmatpush1.msra.mxu0 %v791
    %832 = vmatprep.subr.mxu0 0.0
    %833 = vmatpush1.msra.mxu0 %v792
    %834 = vmatprep.subr.mxu0 0.0
    %835 = vmatpush1.msra.mxu0 %v793
    %836 = vmatprep.subr.mxu0 0.0
    %837 = vmatpush1.msra.mxu0 0.0
    %838 = vmatprep.subr.mxu0 0.0
    %839 = vmatpush1.msra.mxu0 0.0
    %840 = vmatprep.subr.mxu0 0.0
    %841 = vmatpush1.msra.mxu0 0.0
    %842 = vmatprep.subr.mxu0 0.0
    %843 = vmatpush1.msra.mxu0 0.0
    %844 = vmatprep.subr.mxu0 0.0
    %845 = vmatpush1.msra.mxu0 0.0
    %846 = vmatprep.subr.mxu0 0.0
    %847 = vmatpush1.msra.mxu0 0.0
    %848 = vmatprep.subr.mxu0 0.0
    %849 = vmatpush1.msra.mxu0 0.0
    %850 = vmatprep.subr.mxu0 0.0
    %851 = vmatpush1.msra.mxu0 0.0
    %852 = vmatprep.subr.mxu0 0.0
    %853 = vmatpush1.msra.mxu0 0.0
    %854 = vmatprep.subr.mxu0 0.0
    %855 = vmatpush1.msra.mxu0 0.0
    %856 = vmatprep.subr.mxu0 0.0
    %857 = vmatpush1.msra.mxu0 0.0
    %858 = vmatprep.subr.mxu0 0.0
    %859 = vmatpush1.msra.mxu0 0.0
    %860 = vmatprep.subr.mxu0 0.0
    %861 = vmatpush1.msra.mxu0 0.0
    %862 = vmatprep.subr.mxu0 0.0
    %863 = vmatpush1.msra.mxu0 0.0
    %864 = vmatprep.subr.mxu0 0.0
    %865 = vmatpush1.msra.mxu0 0.0
    %866 = vmatprep.subr.mxu0 0.0
    %867 = vmatpush1.msra.mxu0 0.0
    %868 = vmatprep.mubr.f32.mxu0 0.0
    %869 = vmatmul.mubr.f32.gmra.mrb[0].mxu0 %v802
    %v870 = vpop.f32.mrb[0].mxu0
    %v871 = vadd.f32 %v799, %v870
    %v872 = vpop.f32.mrb[0].mxu0
    %873 = vdwg.mxu0
    %vm874 = vcmask 58368
    %875 = vst.msk [vmem:[#allocation7] sm:$0x3] %vm874, %v871
    // Predicated region
    $region38: #{tpu_custom_call.1} parent=1 // pred_check
      _
    $region39: #{tpu_custom_call.1} parent=1 // pred_check_branch
      %877 = sbr.rel (0) target = $region41
    $region40: #{tpu_custom_call.1} parent=1 // pred_region
      %s879 = ssub.s32 32, 32
      %880 = vsyncadd [#allocation4], %s879
      %s882 = sshll.u32 [#allocation7], 4
      %s883 = int_to_ptr.vmem [resolvable:$true] %s882
      %885 = dma.vmem_to_hbm [thread:$0]  %s883, 32, %s7, [#allocation4]
    $region41: #{tpu_custom_call.1} parent=1 // pred_fallthru
      _
    // Predicated region
    $region42: #{tpu_custom_call.1} parent=1 // pred_check
      _
    $region43: #{tpu_custom_call.1} parent=1 // pred_check_branch
      %887 = sbr.rel (0) target = $region45
    $region44: #{tpu_custom_call.1} parent=1 // pred_region
      %s889 = ssub.s32 32, 32
      %890 = vsyncadd [#allocation9], %s889
      %s892 = sshll.u32 [#allocation8], 4
      %s893 = int_to_ptr.vmem [resolvable:$true] %s892
      %895 = dma.vmem_to_hbm [thread:$0]  %s893, 32, %s8, [#allocation9]
    $region45: #{tpu_custom_call.1} parent=1 // pred_fallthru
      _
    // Predicated region
    $region46: #{tpu_custom_call.1} parent=1 // pred_check
      _
    $region47: #{tpu_custom_call.1} parent=1 // pred_check_branch
      %897 = sbr.rel (0) target = $region49
    $region48: #{tpu_custom_call.1} parent=1 // pred_region
      %898 = dma.done [#allocation4], 32
    $region49: #{tpu_custom_call.1} parent=1 // pred_fallthru
      _
    // Predicated region
    $region50: #{tpu_custom_call.1} parent=1 // pred_check
      _
    $region51: #{tpu_custom_call.1} parent=1 // pred_check_branch
      %900 = sbr.rel (0) target = $region53
    $region52: #{tpu_custom_call.1} parent=1 // pred_region
      %901 = dma.done [#allocation9], 32
    $region53: #{tpu_custom_call.1} parent=1 // pred_fallthru
      _
    %902 = vsyncpa [#allocation3], 1
    %903 = vsyncpa [#allocation6], 1
    %904 = vsyncpa [#allocation4], 1
    %905 = vsyncpa [#allocation9], 1

</llo_original>
